<compile_context>
chip_gen: v7x
topology: tpu7x:2x2x1
jax: 0.10.0
libtpu: 0.0.40
codegen_flags: <defaults>
</compile_context>

<pallas_src>
import functools

import jax
import jax.numpy as jnp
from jax import lax
from jax.experimental import pallas as pl
from jax.experimental.pallas import tpu as pltpu


def _serf_kernel(x_ref, o_ref, *, approx_erf: bool):
    x = x_ref[...]
    # Compute in f32 regardless of input dtype (matches the f32 PyTorch
    # reference; keeps exp/log/erf precision for bf16 inputs).
    xf = x.astype(jnp.float32)
    # Numerically stable softplus (PyTorch F.softplus semantics, threshold=20):
    # for large x, softplus(x) ~= x; clamp the exp argument so no inf appears
    # even on the untaken branch.
    sp = jnp.where(xf > 20.0, xf, jnp.log1p(jnp.exp(jnp.minimum(xf, 20.0))))
    if approx_erf:
        # erf(z) ~= tanh(1.1283791671*z + 0.1009107626*z^3)  (~1e-3 abs error).
        # Moves the ~20-op VALU erf polynomial onto the otherwise idle EUP
        # (tanh) slot -- useful on v7x / bf16-v6e where VALU saturates first.
        z2 = sp * sp
        e = jnp.tanh(sp * (1.1283791671 + 0.1009107626 * z2))
    else:
        e = lax.erf(sp)
    o_ref[...] = (xf * e).astype(o_ref.dtype)


def serf(x: jax.Array, *, approx_erf: bool = False) -> jax.Array:
    """Elementwise Serf activation via a Pallas TPU kernel. Works on any shape.

    approx_erf=True swaps the exact erf for a tanh-based approximation
    (~1e-3 accuracy) that is faster on compute-bound chips (v7x, bf16 on v6e).
    """
    orig_shape = x.shape
    dtype = x.dtype
    n = x.size
    if n == 0:
        return x

    itemsize = jnp.dtype(dtype).itemsize
    # Sublane alignment: 8 for f32, 16 for bf16, 32 for int8/fp8.
    sub_align = max(8, 32 // itemsize)

    # ---- Lane (last-dim) selection -----------------------------------------
    # Prefer the largest multiple of 128 that (a) divides n exactly (no pad)
    # and (b) still leaves >= sub_align rows so every sublane is occupied.
    max_lane = 8192
    lane = None
    c = min(max_lane, (n // 128) * 128)
    while c >= 128:
        if n % c == 0 and n // c >= sub_align:
            lane = c
            break
        c -= 128
    if lane is None:
        if n >= 128 * sub_align:
            # Ragged: pad only up to a lane multiple; keep >= sub_align rows.
            lane = min(max_lane, (n // (128 * sub_align)) * 128)
            lane = max(lane, 128)
        else:
            lane = 128  # tiny tensor; occupancy doesn't matter
    rows = pl.cdiv(n, lane)
    n_pad = rows * lane  # pad at most lane-1 elements (serf(0) == 0, sliced off)

    # ---- Block-size / chip-dependent knobs ----------------------------------
    try:
        kind = jax.devices()[0].device_kind.lower()
    except Exception:  # pragma: no cover - defensive
        kind = ""
    is_v5e = ("v5e" in kind) or ("v5 lite" in kind) or ("v5litepod" in kind)
    if is_v5e:
        # v5e: HBM-bound; 2 MiB blocks double-buffered fit the 16 MiB default
        # scoped VMEM with headroom.
        target_block_bytes = 2 * 1024 * 1024
        vmem_limit = None
    else:
        # v6e / v7x: 4 MiB blocks, raise scoped VMEM explicitly.
        target_block_bytes = 4 * 1024 * 1024
        vmem_limit = 48 << 20

    row_block = max(
        sub_align,
        (target_block_bytes // (lane * itemsize)) // sub_align * sub_align,
    )

    if rows <= row_block:
        if rows >= 2 * sub_align:
            # Split into two blocks so the "parallel" axis can actually shard
            # across v7x's two TensorCores.
            row_block = pl.cdiv(pl.cdiv(rows, 2), sub_align) * sub_align
        else:
            # Single block == full array dims (no (8,128) constraint applies).
            row_block = rows
    else:
        grid_n0 = pl.cdiv(rows, row_block)
        if grid_n0 > 1 and grid_n0 % 2 == 1:
            # Prefer an even grid count for 2-TC balance on v7x.
            row_block = max(
                sub_align,
                pl.cdiv(pl.cdiv(rows, grid_n0 + 1), sub_align) * sub_align,
            )
    grid_n = pl.cdiv(rows, row_block)

    # ---- Reshape (pad only when the shape is truly ragged) ------------------
    x_flat = x.reshape(-1)
    if n_pad != n:
        x_flat = jnp.pad(x_flat, (0, n_pad - n))
    x2d = x_flat.reshape(rows, lane)

    cost = pl.CostEstimate(
        flops=30 * n,
        transcendentals=2 * n,
        bytes_accessed=2 * n * itemsize,
    )

    out2d = pl.pallas_call(
        functools.partial(_serf_kernel, approx_erf=approx_erf),
        out_shape=jax.ShapeDtypeStruct((rows, lane), dtype),
        grid_spec=pltpu.PrefetchScalarGridSpec(
            num_scalar_prefetch=0,
            grid=(grid_n,),
            in_specs=[pl.BlockSpec((row_block, lane), lambda i: (i, 0))],
            out_specs=pl.BlockSpec((row_block, lane), lambda i: (i, 0)),
        ),
        compiler_params=pltpu.CompilerParams(
            dimension_semantics=("parallel",),
            vmem_limit_bytes=vmem_limit,
        ),
        cost_estimate=cost,
    )(x2d)

    out_flat = out2d.reshape(-1)
    if n_pad != n:
        out_flat = out_flat[:n]
    return out_flat.reshape(orig_shape)


if __name__ == "__main__":
    key = jax.random.PRNGKey(0)

    # NCHW, small shapes consistent with a conv-net activation input.
    x = jax.random.normal(key, (2, 4, 16, 16), dtype=jnp.float32)
    y = serf(x)
    jax.block_until_ready(y)

    # Reference in plain JAX (PyTorch formula, log1p for stability).
    y_ref = x * lax.erf(jnp.log1p(jnp.exp(x)))
    assert y.shape == x.shape and y.dtype == x.dtype
    assert jnp.allclose(y, y_ref, atol=1e-5, rtol=1e-5)

    # Ragged shape (element count not a multiple of 128) exercises the
    # minimal-padding path.
    x2 = jax.random.normal(jax.random.PRNGKey(1), (2, 3, 17, 17), dtype=jnp.float32)
    y2 = serf(x2)
    jax.block_until_ready(y2)
    y2_ref = x2 * lax.erf(jnp.log1p(jnp.exp(x2)))
    assert jnp.allclose(y2, y2_ref, atol=1e-5, rtol=1e-5)

    print("KERNEL_OK")
</pallas_src>

<mosaic_0001>
module attributes {stable_mosaic.version = 11 : i64} {
  func.func @_serf_kernel(%arg0: i32, %arg1: memref<8x256xf32, #tpu.memory_space<vmem>>, %arg2: memref<8x256xf32, #tpu.memory_space<vmem>>) attributes {dimension_semantics = [#tpu.dimension_semantics<parallel>], iteration_bounds = array<i64: 1>, scalar_prefetch = 0 : i64, scratch_operands = 0 : i64, tpu.core_type = #tpu.core_type<tc>, window_params = [{transform_indices = @transform_0, window_bounds = array<i64: 8, 256>}, {transform_indices = @transform_1, window_bounds = array<i64: 8, 256>}]} {
    %c0 = arith.constant 0 : index
    %c0_0 = arith.constant 0 : index
    %0 = vector.load %arg1[%c0, %c0_0] : memref<8x256xf32, #tpu.memory_space<vmem>>, vector<8x256xf32>
    %cst = arith.constant 2.000000e+01 : f32
    %1 = vector.broadcast %cst : f32 to vector<8x256xf32>
    %2 = arith.cmpf ogt, %0, %1 : vector<8x256xf32>
    %cst_1 = arith.constant 2.000000e+01 : f32
    %3 = vector.broadcast %cst_1 : f32 to vector<8x256xf32>
    %4 = arith.minimumf %0, %3 : vector<8x256xf32>
    %5 = math.exp %4 : vector<8x256xf32>
    %6 = math.log1p %5 : vector<8x256xf32>
    %7 = arith.select %2, %0, %6 : vector<8x256xi1>, vector<8x256xf32>
    %8 = math.erf %7 : vector<8x256xf32>
    %9 = arith.mulf %0, %8 : vector<8x256xf32>
    %c0_2 = arith.constant 0 : index
    %c0_3 = arith.constant 0 : index
    %10 = vector.load %arg2[%c0_2, %c0_3] : memref<8x256xf32, #tpu.memory_space<vmem>>, vector<8x256xf32>
    tpu.vector_store %arg2[%c0_2, %c0_3], %9 {strides = array<i32>} : memref<8x256xf32, #tpu.memory_space<vmem>>, vector<8x256xf32>,
    return
  }
  func.func @transform_0(%arg0: i32) -> (i32, i32) {
    %c0_i32 = arith.constant 0 : i32
    %c0_i32_0 = arith.constant 0 : i32
    return %arg0, %c0_i32 : i32, i32
  }
  func.func @transform_1(%arg0: i32) -> (i32, i32) {
    %c0_i32 = arith.constant 0 : i32
    %c0_i32_0 = arith.constant 0 : i32
    return %arg0, %c0_i32 : i32, i32
  }
}

</mosaic_0001>

<llo_original>
// kernel: tpu_custom_call.1
$region0: #{tpu_custom_call.1}
  #allocation0 [shape = 'u32[]', space=smem, size = 0x4, offset = 0x4, fixed_abs, tag = 'smem constant byte address 0x4 - core index']
  #allocation1 [shape = 'u32[144,128]{1,0:T(1,128)}', space=vmem, size = 0x12000, scoped, tag = 'internal scratch']
  %s0 = inlined_call_operand.hbm [shape: f32[8,256], index: 0, kind: input, shape index: {}]
  %s1 = inlined_call_operand.hbm [shape: f32[8,256], index: 1, kind: output, shape index: {}]
  %s2 = sld [smem:[#allocation0]]
  $region18: #{tpu_custom_call.1} parent=0
    _
  %s4 = ssub.s32 1, %s2
  %s5 = scalar_select 0, %s4, %s2
  $region1: #{tpu_custom_call.1} parent=0
    #allocation2 [shape = 'u8[8192]{0}', space=vmem, size = 0x2000, scoped, tag = 'input window, operand 0, single buffered']
    #allocation3 [shape = 's32[1]{0}', space=sflag, size = 0x4, scoped, tag = 'scoped memory for tpu_custom_call.1']
    #allocation4 [shape = 's32[1]{0}', space=sflag, size = 0x4, scoped, tag = 'scoped memory for tpu_custom_call.1']
    #allocation5 [shape = 'u8[8192]{0}', space=vmem, size = 0x2000, scoped, tag = 'output window, operand 0, single buffered']
    %6 = vsyncpa [#allocation3], 0
    %7 = vsyncpa [#allocation4], 0
    // Predicated region
    $region2: #{tpu_custom_call.1} parent=1 // pred_check
      _
    $region3: #{tpu_custom_call.1} parent=1 // pred_check_branch
      %9 = sbr.rel (0) target = $region5
    $region4: #{tpu_custom_call.1} parent=1 // pred_region
      %s11 = ssub.s32 256, 256
      %12 = vsyncadd [#allocation3], %s11
      %s14 = sshll.u32 [#allocation2], 4
      %s15 = int_to_ptr.vmem [resolvable:$true] %s14
      %17 = dma.hbm_to_vmem [thread:$0]  %s0, 256, %s15, [#allocation3]
    $region5: #{tpu_custom_call.1} parent=1 // pred_fallthru
      _
    // Predicated region
    $region6: #{tpu_custom_call.1} parent=1 // pred_check
      _
    $region7: #{tpu_custom_call.1} parent=1 // pred_check_branch
      %19 = sbr.rel (0) target = $region9
    $region8: #{tpu_custom_call.1} parent=1 // pred_region
      %20 = dma.done [#allocation3], 256
    $region9: #{tpu_custom_call.1} parent=1 // pred_fallthru
      _
    %v21 = vld [vmem:[#allocation2] sm:$0xff]
    %v22 = vld [vmem:[#allocation2 + $0x8] sm:$0xff]
    %vm23 = vcmp.gt.f32.partialorder %v21, 20.0
    %vm24 = vcmp.gt.f32.partialorder %v22, 20.0
    %v25 = vmin.f32 %v21, 20.0
    %v26 = vmin.f32 %v22, 20.0
    %v27 = vmul.f32 %v25, 1.442695
    %v28 = vpow.pop %v27
    %v29 = vmul.f32 %v26, 1.442695
    %v30 = vpow.pop %v29
    %v31 = vadd.f32 %v28, 1.0
    %v32 = vlog2.pop %v31
    %v33 = vmul.f32 %v32, 0.6931472
    %v34 = vmul.f32 -0.5, %v28
    %v35 = vadd.f32 %v34, 1.0
    %v36 = vmul.f32 %v35, %v28
    %v37 = vand.u32 2147483647, %v28
    %vm38 = vcmp.lt.f32.partialorder %v37, 0.0004427343
    %v39 = vsel %vm38, %v36, %v33
    %v40 = vadd.f32 %v30, 1.0
    %v41 = vlog2.pop %v40
    %v42 = vmul.f32 %v41, 0.6931472
    %v43 = vmul.f32 -0.5, %v30
    %v44 = vadd.f32 %v43, 1.0
    %v45 = vmul.f32 %v44, %v30
    %v46 = vand.u32 2147483647, %v30
    %vm47 = vcmp.lt.f32.partialorder %v46, 0.0004427343
    %v48 = vsel %vm47, %v45, %v42
    %v49 = vsel %vm23, %v21, %v39
    %v50 = vsel %vm24, %v22, %v48
    %v51 = verf.f32.pop %v49
    %v52 = verf.f32.pop %v50
    %v53 = vmul.f32 %v21, %v51
    %v54 = vmul.f32 %v22, %v52
    %55 = vst [vmem:[#allocation5] sm:$0xff] %v53
    %56 = vst [vmem:[#allocation5 + $0x8] sm:$0xff] %v54
    // Predicated region
    $region10: #{tpu_custom_call.1} parent=1 // pred_check
      _
    $region11: #{tpu_custom_call.1} parent=1 // pred_check_branch
      %58 = sbr.rel (0) target = $region13
    $region12: #{tpu_custom_call.1} parent=1 // pred_region
      %s60 = ssub.s32 256, 256
      %61 = vsyncadd [#allocation4], %s60
      %s63 = sshll.u32 [#allocation5], 4
      %s64 = int_to_ptr.vmem [resolvable:$true] %s63
      %66 = dma.vmem_to_hbm [thread:$0]  %s64, 256, %s1, [#allocation4]
    $region13: #{tpu_custom_call.1} parent=1 // pred_fallthru
      _
    // Predicated region
    $region14: #{tpu_custom_call.1} parent=1 // pred_check
      _
    $region15: #{tpu_custom_call.1} parent=1 // pred_check_branch
      %68 = sbr.rel (0) target = $region17
    $region16: #{tpu_custom_call.1} parent=1 // pred_region
      %69 = dma.done [#allocation4], 256
    $region17: #{tpu_custom_call.1} parent=1 // pred_fallthru
      _
    %70 = vsyncpa [#allocation3], 1
    %71 = vsyncpa [#allocation4], 1

</llo_original>
